<compile_context>
chip_gen: v7x
topology: tpu7x:2x2x1
jax: 0.10.0
libtpu: 0.0.40
codegen_flags: <defaults>
</compile_context>

<pallas_src>
import functools
import math

import numpy as np
import jax
import jax.numpy as jnp
from jax.experimental import pallas as pl
from jax.experimental.pallas import tpu as pltpu


# ----------------------------- activation zoo (matches the torch dict) -----------------------------
def _apply_activation(z, name):
    """f32 elementwise epilogue; matches the PyTorch activations."""
    if name is None:
        return z
    if name == "relu":
        return jnp.maximum(z, 0.0)
    if name == "tanh":
        return jnp.tanh(z)
    if name == "softplus":  # numerically-stable, matches nn.Softplus(beta=1)
        return jnp.maximum(z, 0.0) + jnp.log1p(jnp.exp(-jnp.abs(z)))
    if name == "htanh":
        return jnp.clip(z, -1.0, 1.0)
    if name == "sigmoid":
        return jax.nn.sigmoid(z)
    if name == "hsigmoid":  # nn.Hardsigmoid
        return jnp.clip(z / 6.0 + 0.5, 0.0, 1.0)
    if name == "tanhshrink":
        return z - jnp.tanh(z)
    if name == "abs":
        return jnp.abs(z)
    raise ValueError(f"unknown activation {name}")


def _np_activation(z, name):
    """float64 numpy reference for the sanity check."""
    if name == "relu":
        return np.maximum(z, 0.0)
    if name == "tanh":
        return np.tanh(z)
    if name == "softplus":
        return np.maximum(z, 0.0) + np.log1p(np.exp(-np.abs(z)))
    if name == "htanh":
        return np.clip(z, -1.0, 1.0)
    if name == "sigmoid":
        return 1.0 / (1.0 + np.exp(-z))
    if name == "hsigmoid":
        return np.clip(z / 6.0 + 0.5, 0.0, 1.0)
    if name == "tanhshrink":
        return z - np.tanh(z)
    if name == "abs":
        return np.abs(z)
    raise ValueError(f"unknown activation {name}")


def _round_up(n, m):
    return ((n + m - 1) // m) * m


# ----------------------------------- fused MLP Pallas kernel -----------------------------------
def _fused_mlp_kernel(*refs, num_layers, widths, activation, compute_dtype):
    """refs = (x_ref, w_0, b_0, ..., w_{L-1}, b_{L-1}, o_ref, h0, h1).

    x_ref:  (TM, widths[0])        compute_dtype
    w_l:    (widths[l], widths[l+1]) compute_dtype   (VMEM-resident, padded)
    b_l:    (1, widths[l+1])       float32
    o_ref:  (TM, widths[-1])       float32
    h0/h1:  (TM, max(widths))      compute_dtype ping-pong activation scratch
    """
    x_ref = refs[0]
    o_ref = refs[1 + 2 * num_layers]
    hbufs = (refs[2 + 2 * num_layers], refs[3 + 2 * num_layers])

    a = x_ref[...]  # (TM, widths[0]) in compute dtype
    for l in range(num_layers):  # static Python unroll (layer count is compile-time)
        w_ref = refs[1 + 2 * l]
        b_ref = refs[2 + 2 * l]
        out_w = widths[l + 1]

        # MXU matmul with f32 accumulation; bias + activation on VPU/EUP in f32.
        z = jnp.dot(a, w_ref[...], preferred_element_type=jnp.float32)
        z = z + b_ref[...]  # (1, out_w) f32 bias broadcasts over rows

        if l < num_layers - 1:
            z = _apply_activation(z, activation)          # f32 epilogue (v5e-safe)
            dst = hbufs[l % 2]                            # ping-pong VMEM scratch
            dst[:, :out_w] = z.astype(compute_dtype)
            a = dst[:, :out_w]
        else:
            o_ref[...] = z.astype(o_ref.dtype)            # lane-dense (padded) store


def fnn_forward_pallas(x, padded_weights, padded_biases, activation, *,
                       out_features, compute_dtype=jnp.bfloat16, tm=256):
    """activation(... activation(x @ W0 + b0) ... ) @ W_{L-1} + b_{L-1}, fused."""
    M, K = x.shape
    L = len(padded_weights)
    widths = (padded_weights[0].shape[0],) + tuple(w.shape[1] for w in padded_weights)
    max_w = max(widths)

    # Batch tiling: single block for small batches, TM-row tiles otherwise.
    if M <= tm:
        TM = _round_up(max(M, 1), 8)
        M_pad = TM
    else:
        TM = tm
        M_pad = _round_up(M, TM)

    # Pad input to (M_pad, widths[0]); padded rows/cols are zero and get sliced away.
    x_p = jnp.zeros((M_pad, widths[0]), dtype=compute_dtype)
    x_p = x_p.at[:M, :K].set(x.astype(compute_dtype))

    const_map = lambda i: (0, 0)                       # weights/bias: VMEM-resident
    in_specs = [pl.BlockSpec((TM, widths[0]), lambda i: (i, 0))]
    inputs = [x_p]
    for w, b in zip(padded_weights, padded_biases):
        kin, kout = w.shape
        in_specs.append(pl.BlockSpec((kin, kout), const_map))
        in_specs.append(pl.BlockSpec((1, kout), const_map))
        inputs += [w, b]

    kernel = functools.partial(
        _fused_mlp_kernel,
        num_layers=L, widths=widths, activation=activation, compute_dtype=compute_dtype)

    out = pl.pallas_call(
        kernel,
        out_shape=jax.ShapeDtypeStruct((M_pad, widths[-1]), jnp.float32),
        grid=(M_pad // TM,),
        in_specs=in_specs,
        out_specs=pl.BlockSpec((TM, widths[-1]), lambda i: (i, 0)),
        scratch_shapes=[pltpu.VMEM((TM, max_w), compute_dtype),
                        pltpu.VMEM((TM, max_w), compute_dtype)],
        compiler_params=pltpu.CompilerParams(
            dimension_semantics=("parallel",)),   # megacore on v7x; no-op on v5e/v6e
    )(*inputs)

    return out[:M, :out_features]


# --------------------------------------------- FNN module ---------------------------------------------
class FNN:
    """JAX/Pallas port of the PyTorch FNN (xavier_normal_ weights, zero bias)."""

    def __init__(self, layer_sizes, activation, key,
                 compute_dtype=jnp.bfloat16, tm=256):
        self.activation = activation
        self.compute_dtype = compute_dtype
        self.tm = tm
        self.layer_sizes = list(layer_sizes)
        self.params = []        # unpadded f32 (W:(in,out), b:(out,)) — ground truth
        self.padded_w = []      # (in_pad, out_pad) in compute_dtype, lane-dense
        self.padded_b = []      # (1, out_pad) f32

        for i in range(1, len(layer_sizes)):
            fan_in, fan_out = layer_sizes[i - 1], layer_sizes[i]
            key, wkey = jax.random.split(key)
            # xavier_normal_: std = gain * sqrt(2 / (fan_in + fan_out)), gain = 1
            std = math.sqrt(2.0 / (fan_in + fan_out))
            w = std * jax.random.normal(wkey, (fan_in, fan_out), dtype=jnp.float32)
            b = jnp.zeros((fan_out,), dtype=jnp.float32)
            self.params.append((w, b))

            kin_p, kout_p = _round_up(fan_in, 128), _round_up(fan_out, 128)
            w_p = jnp.zeros((kin_p, kout_p), jnp.float32).at[:fan_in, :fan_out].set(w)
            b_p = jnp.zeros((1, kout_p), jnp.float32).at[0, :fan_out].set(b)
            self.padded_w.append(w_p.astype(compute_dtype))
            self.padded_b.append(b_p)  # bias stays f32 (added in f32 epilogue)

    def __call__(self, z):
        return fnn_forward_pallas(
            z, self.padded_w, self.padded_b, self.activation,
            out_features=self.layer_sizes[-1],
            compute_dtype=self.compute_dtype, tm=self.tm)


def fnn_reference_np(x, params, activation):
    """float64 numpy reference of the PyTorch forward pass."""
    z = np.asarray(x, dtype=np.float64)
    for (w, b) in params[:-1]:
        z = _np_activation(z @ np.asarray(w, np.float64) + np.asarray(b, np.float64),
                           activation)
    w, b = params[-1]
    return z @ np.asarray(w, np.float64) + np.asarray(b, np.float64)


if __name__ == "__main__":
    key = jax.random.PRNGKey(0)
    key, xkey, pkey, xkey2 = jax.random.split(key, 4)

    layer_sizes = [16, 32, 32, 8]
    batch = 8
    x = jax.random.normal(xkey, (batch, layer_sizes[0]), dtype=jnp.float32)

    # --- f32 matmul path (single batch block), tight check vs f64 numpy reference ---
    model_f32 = FNN(layer_sizes, "tanh", pkey, compute_dtype=jnp.float32)
    out_f32 = jax.block_until_ready(model_f32(x))
    ref = fnn_reference_np(x, model_f32.params, "tanh")
    assert out_f32.shape == (batch, layer_sizes[-1])
    assert np.allclose(np.asarray(out_f32, np.float64), ref, atol=1e-4, rtol=1e-4)

    # --- bf16 matmul path (v6e/v7x-friendly), f32 accumulation + f32 epilogue ---
    model_bf16 = FNN(layer_sizes, "tanh", pkey, compute_dtype=jnp.bfloat16)
    out_bf16 = jax.block_until_ready(model_bf16(x))
    assert np.allclose(np.asarray(out_bf16, np.float64), ref, atol=5e-2, rtol=5e-2)

    # --- larger batch exercising the tiled "parallel" grid + batch padding ---
    big_batch = 300
    xb = jax.random.normal(xkey2, (big_batch, layer_sizes[0]), dtype=jnp.float32)
    model_grid = FNN(layer_sizes, "softplus", pkey, compute_dtype=jnp.float32, tm=128)
    out_big = jax.block_until_ready(model_grid(xb))
    ref_big = fnn_reference_np(xb, model_grid.params, "softplus")
    assert out_big.shape == (big_batch, layer_sizes[-1])
    assert np.allclose(np.asarray(out_big, np.float64), ref_big, atol=1e-4, rtol=1e-4)

    print("KERNEL_OK")
</pallas_src>

<mosaic_0001>
module attributes {stable_mosaic.version = 11 : i64} {
  func.func @_fused_mlp_kernel(%arg0: i32, %arg1: memref<8x128xf32, #tpu.memory_space<vmem>>, %arg2: memref<128x128xf32, #tpu.memory_space<vmem>>, %arg3: memref<1x128xf32, #tpu.memory_space<vmem>>, %arg4: memref<128x128xf32, #tpu.memory_space<vmem>>, %arg5: memref<1x128xf32, #tpu.memory_space<vmem>>, %arg6: memref<128x128xf32, #tpu.memory_space<vmem>>, %arg7: memref<1x128xf32, #tpu.memory_space<vmem>>, %arg8: memref<8x128xf32, #tpu.memory_space<vmem>>, %arg9: memref<8x128xf32, #tpu.memory_space<vmem>>, %arg10: memref<8x128xf32, #tpu.memory_space<vmem>>) attributes {dimension_semantics = [#tpu.dimension_semantics<parallel>], iteration_bounds = array<i64: 1>, scalar_prefetch = 0 : i64, scratch_operands = 2 : i64, tpu.core_type = #tpu.core_type<tc>, window_params = [{transform_indices = @transform_0, window_bounds = array<i64: 8, 128>}, {pipeline_mode = #tpu.pipeline_mode<synchronous>, transform_indices = @transform_1, window_bounds = array<i64: 128, 128>}, {pipeline_mode = #tpu.pipeline_mode<synchronous>, transform_indices = @transform_2, window_bounds = array<i64: 1, 128>}, {pipeline_mode = #tpu.pipeline_mode<synchronous>, transform_indices = @transform_3, window_bounds = array<i64: 128, 128>}, {pipeline_mode = #tpu.pipeline_mode<synchronous>, transform_indices = @transform_4, window_bounds = array<i64: 1, 128>}, {pipeline_mode = #tpu.pipeline_mode<synchronous>, transform_indices = @transform_5, window_bounds = array<i64: 128, 128>}, {pipeline_mode = #tpu.pipeline_mode<synchronous>, transform_indices = @transform_6, window_bounds = array<i64: 1, 128>}, {transform_indices = @transform_7, window_bounds = array<i64: 8, 128>}]} {
    %c0 = arith.constant 0 : index
    %c0_0 = arith.constant 0 : index
    %0 = vector.load %arg1[%c0, %c0_0] : memref<8x128xf32, #tpu.memory_space<vmem>>, vector<8x128xf32>
    %c0_1 = arith.constant 0 : index
    %c0_2 = arith.constant 0 : index
    %1 = vector.load %arg2[%c0_1, %c0_2] : memref<128x128xf32, #tpu.memory_space<vmem>>, vector<128x128xf32>
    %cst = arith.constant dense<0.000000e+00> : vector<8x128xf32>
    %2 = tpu.matmul %0, %1, %cst {dimension_numbers = #tpu.dot_dimension_numbers<[1], [0], [0], [1], [0, 0, 1, 1], [], []>} : vector<8x128xf32>, vector<128x128xf32>, vector<8x128xf32> -> vector<8x128xf32>
    %c0_3 = arith.constant 0 : index
    %c0_4 = arith.constant 0 : index
    %3 = vector.load %arg3[%c0_3, %c0_4] : memref<1x128xf32, #tpu.memory_space<vmem>>, vector<1x128xf32>
    %4 = vector.broadcast %3 : vector<1x128xf32> to vector<8x128xf32>
    %5 = arith.addf %2, %4 : vector<8x128xf32>
    %6 = math.tanh %5 : vector<8x128xf32>
    %c0_5 = arith.constant 0 : index
    %c0_6 = arith.constant 0 : index
    %7 = vector.load %arg9[%c0_5, %c0_6] : memref<8x128xf32, #tpu.memory_space<vmem>>, vector<8x128xf32>
    tpu.vector_store %arg9[%c0_5, %c0_6], %6 {strides = array<i32>} : memref<8x128xf32, #tpu.memory_space<vmem>>, vector<8x128xf32>,
    %c0_7 = arith.constant 0 : index
    %c0_8 = arith.constant 0 : index
    %8 = vector.load %arg9[%c0_7, %c0_8] : memref<8x128xf32, #tpu.memory_space<vmem>>, vector<8x128xf32>
    %c0_9 = arith.constant 0 : index
    %c0_10 = arith.constant 0 : index
    %9 = vector.load %arg4[%c0_9, %c0_10] : memref<128x128xf32, #tpu.memory_space<vmem>>, vector<128x128xf32>
    %cst_11 = arith.constant dense<0.000000e+00> : vector<8x128xf32>
    %10 = tpu.matmul %8, %9, %cst_11 {dimension_numbers = #tpu.dot_dimension_numbers<[1], [0], [0], [1], [0, 0, 1, 1], [], []>} : vector<8x128xf32>, vector<128x128xf32>, vector<8x128xf32> -> vector<8x128xf32>
    %c0_12 = arith.constant 0 : index
    %c0_13 = arith.constant 0 : index
    %11 = vector.load %arg5[%c0_12, %c0_13] : memref<1x128xf32, #tpu.memory_space<vmem>>, vector<1x128xf32>
    %12 = vector.broadcast %11 : vector<1x128xf32> to vector<8x128xf32>
    %13 = arith.addf %10, %12 : vector<8x128xf32>
    %14 = math.tanh %13 : vector<8x128xf32>
    %c0_14 = arith.constant 0 : index
    %c0_15 = arith.constant 0 : index
    %15 = vector.load %arg10[%c0_14, %c0_15] : memref<8x128xf32, #tpu.memory_space<vmem>>, vector<8x128xf32>
    tpu.vector_store %arg10[%c0_14, %c0_15], %14 {strides = array<i32>} : memref<8x128xf32, #tpu.memory_space<vmem>>, vector<8x128xf32>,
    %c0_16 = arith.constant 0 : index
    %c0_17 = arith.constant 0 : index
    %16 = vector.load %arg10[%c0_16, %c0_17] : memref<8x128xf32, #tpu.memory_space<vmem>>, vector<8x128xf32>
    %c0_18 = arith.constant 0 : index
    %c0_19 = arith.constant 0 : index
    %17 = vector.load %arg6[%c0_18, %c0_19] : memref<128x128xf32, #tpu.memory_space<vmem>>, vector<128x128xf32>
    %cst_20 = arith.constant dense<0.000000e+00> : vector<8x128xf32>
    %18 = tpu.matmul %16, %17, %cst_20 {dimension_numbers = #tpu.dot_dimension_numbers<[1], [0], [0], [1], [0, 0, 1, 1], [], []>} : vector<8x128xf32>, vector<128x128xf32>, vector<8x128xf32> -> vector<8x128xf32>
    %c0_21 = arith.constant 0 : index
    %c0_22 = arith.constant 0 : index
    %19 = vector.load %arg7[%c0_21, %c0_22] : memref<1x128xf32, #tpu.memory_space<vmem>>, vector<1x128xf32>
    %20 = vector.broadcast %19 : vector<1x128xf32> to vector<8x128xf32>
    %21 = arith.addf %18, %20 : vector<8x128xf32>
    %c0_23 = arith.constant 0 : index
    %c0_24 = arith.constant 0 : index
    %22 = vector.load %arg8[%c0_23, %c0_24] : memref<8x128xf32, #tpu.memory_space<vmem>>, vector<8x128xf32>
    tpu.vector_store %arg8[%c0_23, %c0_24], %21 {strides = array<i32>} : memref<8x128xf32, #tpu.memory_space<vmem>>, vector<8x128xf32>,
    return
  }
  func.func @transform_0(%arg0: i32) -> (i32, i32) {
    %c0_i32 = arith.constant 0 : i32
    %c0_i32_0 = arith.constant 0 : i32
    return %arg0, %c0_i32 : i32, i32
  }
  func.func @transform_1(%arg0: i32) -> (i32, i32) {
    %c0_i32 = arith.constant 0 : i32
    %c0_i32_0 = arith.constant 0 : i32
    %c0_i32_1 = arith.constant 0 : i32
    return %c0_i32, %c0_i32_0 : i32, i32
  }
  func.func @transform_2(%arg0: i32) -> (i32, i32) {
    %c0_i32 = arith.constant 0 : i32
    %c0_i32_0 = arith.constant 0 : i32
    %c0_i32_1 = arith.constant 0 : i32
    return %c0_i32, %c0_i32_0 : i32, i32
  }
  func.func @transform_3(%arg0: i32) -> (i32, i32) {
    %c0_i32 = arith.constant 0 : i32
    %c0_i32_0 = arith.constant 0 : i32
    %c0_i32_1 = arith.constant 0 : i32
    return %c0_i32, %c0_i32_0 : i32, i32
  }
  func.func @transform_4(%arg0: i32) -> (i32, i32) {
    %c0_i32 = arith.constant 0 : i32
    %c0_i32_0 = arith.constant 0 : i32
    %c0_i32_1 = arith.constant 0 : i32
    return %c0_i32, %c0_i32_0 : i32, i32
  }
  func.func @transform_5(%arg0: i32) -> (i32, i32) {
    %c0_i32 = arith.constant 0 : i32
    %c0_i32_0 = arith.constant 0 : i32
    %c0_i32_1 = arith.constant 0 : i32
    return %c0_i32, %c0_i32_0 : i32, i32
  }
  func.func @transform_6(%arg0: i32) -> (i32, i32) {
    %c0_i32 = arith.constant 0 : i32
    %c0_i32_0 = arith.constant 0 : i32
    %c0_i32_1 = arith.constant 0 : i32
    return %c0_i32, %c0_i32_0 : i32, i32
  }
  func.func @transform_7(%arg0: i32) -> (i32, i32) {
    %c0_i32 = arith.constant 0 : i32
    %c0_i32_0 = arith.constant 0 : i32
    return %arg0, %c0_i32 : i32, i32
  }
}

</mosaic_0001>

<llo_original>
// kernel: tpu_custom_call.1
$region0: #{tpu_custom_call.1}
  #allocation0 [shape = 'u32[]', space=smem, size = 0x4, offset = 0x4, fixed_abs, tag = 'smem constant byte address 0x4 - core index']
  #allocation1 [shape = 'u32[144,128]{1,0:T(1,128)}', space=vmem, size = 0x12000, scoped, tag = 'internal scratch']
  #allocation2 [shape = 'f32[8,128]{1,0:T(8,128)}', space=vmem, size = 0x1000, scoped, tag = 'scratch operand']
  #allocation3 [shape = 'f32[8,128]{1,0:T(8,128)}', space=vmem, size = 0x1000, scoped, tag = 'scratch operand']
  %s0 = inlined_call_operand.hbm [shape: f32[8,128], index: 0, kind: input, shape index: {}]
  %s1 = inlined_call_operand.hbm [shape: f32[128,128], index: 1, kind: input, shape index: {}]
  %s2 = inlined_call_operand.vmem [shape: f32[1,128], index: 2, kind: input, shape index: {}]
  %s3 = inlined_call_operand.hbm [shape: f32[128,128], index: 3, kind: input, shape index: {}]
  %s4 = inlined_call_operand.vmem [shape: f32[1,128], index: 4, kind: input, shape index: {}]
  %s5 = inlined_call_operand.hbm [shape: f32[128,128], index: 5, kind: input, shape index: {}]
  %s6 = inlined_call_operand.vmem [shape: f32[1,128], index: 6, kind: input, shape index: {}]
  %s7 = inlined_call_operand.hbm [shape: f32[8,128], index: 7, kind: output, shape index: {}]
  %s8 = sld [smem:[#allocation0]]
  $region54: #{tpu_custom_call.1} parent=0
    _
  %s10 = ssub.s32 1, %s8
  %s11 = scalar_select 0, %s10, %s8
  $region1: #{tpu_custom_call.1} parent=0
    #allocation4 [shape = 'u8[4096]{0}', space=vmem, size = 0x1000, scoped, tag = 'input window, operand 0, single buffered']
    #allocation5 [shape = 's32[1]{0}', space=sflag, size = 0x4, scoped, tag = 'scoped memory for tpu_custom_call.1']
    #allocation6 [shape = 's32[1]{0}', space=sflag, size = 0x4, scoped, tag = 'scoped memory for tpu_custom_call.1']
    #allocation7 [shape = 'u8[65536]{0}', space=vmem, size = 0x10000, scoped, tag = 'input window, operand 1, single buffered']
    #allocation8 [shape = 's32[1]{0}', space=sflag, size = 0x4, scoped, tag = 'scoped memory for tpu_custom_call.1']
    #allocation9 [shape = 'u8[65536]{0}', space=vmem, size = 0x10000, scoped, tag = 'input window, operand 3, single buffered']
    #allocation10 [shape = 'u8[65536]{0}', space=vmem, size = 0x10000, scoped, tag = 'input window, operand 5, single buffered']
    #allocation11 [shape = 's32[1]{0}', space=sflag, size = 0x4, scoped, tag = 'scoped memory for tpu_custom_call.1']
    #allocation12 [shape = 'u8[4096]{0}', space=vmem, size = 0x1000, scoped, tag = 'output window, operand 0, single buffered']
    %12 = vsyncpa [#allocation5], 0
    %13 = vsyncpa [#allocation8], 0
    %14 = vsyncpa [#allocation11], 0
    %15 = vsyncpa [#allocation6], 0
    // Predicated region
    $region2: #{tpu_custom_call.1} parent=1 // pred_check
      _
    $region3: #{tpu_custom_call.1} parent=1 // pred_check_branch
      %17 = sbr.rel (0) target = $region5
    $region4: #{tpu_custom_call.1} parent=1 // pred_region
      %s19 = ssub.s32 128, 128
      %20 = vsyncadd [#allocation5], %s19
      %s22 = sshll.u32 [#allocation4], 4
      %s23 = int_to_ptr.vmem [resolvable:$true] %s22
      %25 = dma.hbm_to_vmem [thread:$0]  %s0, 128, %s23, [#allocation5]
    $region5: #{tpu_custom_call.1} parent=1 // pred_fallthru
      _
    // Predicated region
    $region6: #{tpu_custom_call.1} parent=1 // pred_check
      _
    $region7: #{tpu_custom_call.1} parent=1 // pred_check_branch
      %27 = sbr.rel (0) target = $region9
    $region8: #{tpu_custom_call.1} parent=1 // pred_region
      %s29 = ssub.s32 2048, 2048
      %30 = vsyncadd [#allocation8], %s29
      %s31 = sshll.u32 [#allocation7], 4
      %s32 = int_to_ptr.vmem [resolvable:$true] %s31
      %37 = dma.hbm_to_vmem [thread:$0]  %s1, 2048, %s32, [#allocation8], 128, 128, 8
    $region9: #{tpu_custom_call.1} parent=1 // pred_fallthru
      _
    // Predicated region
    $region10: #{tpu_custom_call.1} parent=1 // pred_check
      _
    $region11: #{tpu_custom_call.1} parent=1 // pred_check_branch
      %39 = sbr.rel (0) target = $region13
    $region12: #{tpu_custom_call.1} parent=1 // pred_region
      _
    $region13: #{tpu_custom_call.1} parent=1 // pred_fallthru
      _
    // Predicated region
    $region14: #{tpu_custom_call.1} parent=1 // pred_check
      _
    $region15: #{tpu_custom_call.1} parent=1 // pred_check_branch
      %41 = sbr.rel (0) target = $region17
    $region16: #{tpu_custom_call.1} parent=1 // pred_region
      %s43 = ssub.s32 2048, 2048
      %44 = vsyncadd [#allocation8], %s43
      %s45 = sshll.u32 [#allocation9], 4
      %s46 = int_to_ptr.vmem [resolvable:$true] %s45
      %51 = dma.hbm_to_vmem [thread:$0]  %s3, 2048, %s46, [#allocation8], 128, 128, 8
    $region17: #{tpu_custom_call.1} parent=1 // pred_fallthru
      _
    // Predicated region
    $region18: #{tpu_custom_call.1} parent=1 // pred_check
      _
    $region19: #{tpu_custom_call.1} parent=1 // pred_check_branch
      %53 = sbr.rel (0) target = $region21
    $region20: #{tpu_custom_call.1} parent=1 // pred_region
      _
    $region21: #{tpu_custom_call.1} parent=1 // pred_fallthru
      _
    // Predicated region
    $region22: #{tpu_custom_call.1} parent=1 // pred_check
      _
    $region23: #{tpu_custom_call.1} parent=1 // pred_check_branch
      %55 = sbr.rel (0) target = $region25
    $region24: #{tpu_custom_call.1} parent=1 // pred_region
      %s57 = ssub.s32 2048, 2048
      %58 = vsyncadd [#allocation11], %s57
      %s59 = sshll.u32 [#allocation10], 4
      %s60 = int_to_ptr.vmem [resolvable:$true] %s59
      %65 = dma.hbm_to_vmem [thread:$0]  %s5, 2048, %s60, [#allocation11], 128, 128, 8
    $region25: #{tpu_custom_call.1} parent=1 // pred_fallthru
      _
    // Predicated region
    $region26: #{tpu_custom_call.1} parent=1 // pred_check
      _
    $region27: #{tpu_custom_call.1} parent=1 // pred_check_branch
      %67 = sbr.rel (0) target = $region29
    $region28: #{tpu_custom_call.1} parent=1 // pred_region
      _
    $region29: #{tpu_custom_call.1} parent=1 // pred_fallthru
      _
    // Predicated region
    $region30: #{tpu_custom_call.1} parent=1 // pred_check
      _
    $region31: #{tpu_custom_call.1} parent=1 // pred_check_branch
      %69 = sbr.rel (0) target = $region33
    $region32: #{tpu_custom_call.1} parent=1 // pred_region
      %70 = dma.done [#allocation5], 128
    $region33: #{tpu_custom_call.1} parent=1 // pred_fallthru
      _
    // Predicated region
    $region34: #{tpu_custom_call.1} parent=1 // pred_check
      _
    $region35: #{tpu_custom_call.1} parent=1 // pred_check_branch
      %72 = sbr.rel (0) target = $region37
    $region36: #{tpu_custom_call.1} parent=1 // pred_region
      %73 = dma.done [#allocation8], 2048
    $region37: #{tpu_custom_call.1} parent=1 // pred_fallthru
      _
    // Predicated region
    $region38: #{tpu_custom_call.1} parent=1 // pred_check
      _
    $region39: #{tpu_custom_call.1} parent=1 // pred_check_branch
      %75 = sbr.rel (0) target = $region41
    $region40: #{tpu_custom_call.1} parent=1 // pred_region
      %76 = dma.done [#allocation8], 2048
    $region41: #{tpu_custom_call.1} parent=1 // pred_fallthru
      _
    // Predicated region
    $region42: #{tpu_custom_call.1} parent=1 // pred_check
      _
    $region43: #{tpu_custom_call.1} parent=1 // pred_check_branch
      %78 = sbr.rel (0) target = $region45
    $region44: #{tpu_custom_call.1} parent=1 // pred_region
      %79 = dma.done [#allocation11], 2048
    $region45: #{tpu_custom_call.1} parent=1 // pred_fallthru
      _
    %v80 = vld [vmem:[#allocation4] sm:$0xff]
    %v81 = vld [vmem:[#allocation7] sm:$0xff]
    %v82 = vld [vmem:[#allocation7 + $0x8] sm:$0xff]
    %v83 = vld [vmem:[#allocation7 + $0x10] sm:$0xff]
    %v84 = vld [vmem:[#allocation7 + $0x18] sm:$0xff]
    %v85 = vld [vmem:[#allocation7 + $0x20] sm:$0xff]
    %v86 = vld [vmem:[#allocation7 + $0x28] sm:$0xff]
    %v87 = vld [vmem:[#allocation7 + $0x30] sm:$0xff]
    %v88 = vld [vmem:[#allocation7 + $0x38] sm:$0xff]
    %v89 = vld [vmem:[#allocation7 + $0x40] sm:$0xff]
    %v90 = vld [vmem:[#allocation7 + $0x48] sm:$0xff]
    %v91 = vld [vmem:[#allocation7 + $0x50] sm:$0xff]
    %v92 = vld [vmem:[#allocation7 + $0x58] sm:$0xff]
    %v93 = vld [vmem:[#allocation7 + $0x60] sm:$0xff]
    %v94 = vld [vmem:[#allocation7 + $0x68] sm:$0xff]
    %v95 = vld [vmem:[#allocation7 + $0x70] sm:$0xff]
    %v96 = vld [vmem:[#allocation7 + $0x78] sm:$0xff]
    %v97 = vld [vmem:[%s2] sm:$0x1]
    %v99 = vlaneseq
    %v100 = vshrl.u32 %v99, 7
    %v101 = vsub.s32 0, %v100
    %v102 = vrot.slane %v97, %v101
    %104 = vmatprep.subr.mxu0 0.0
    %105 = vmatpush1.msra.mxu0 %v81
    %106 = vmatprep.subr.mxu0 0.0
    %107 = vmatpush1.msra.mxu0 %v82
    %108 = vmatprep.subr.mxu0 0.0
    %109 = vmatpush1.msra.mxu0 %v83
    %110 = vmatprep.subr.mxu0 0.0
    %111 = vmatpush1.msra.mxu0 %v84
    %112 = vmatprep.subr.mxu0 0.0
    %113 = vmatpush1.msra.mxu0 %v85
    %114 = vmatprep.subr.mxu0 0.0
    %115 = vmatpush1.msra.mxu0 %v86
    %116 = vmatprep.subr.mxu0 0.0
    %117 = vmatpush1.msra.mxu0 %v87
    %118 = vmatprep.subr.mxu0 0.0
    %119 = vmatpush1.msra.mxu0 %v88
    %120 = vmatprep.subr.mxu0 0.0
    %121 = vmatpush1.msra.mxu0 %v89
    %122 = vmatprep.subr.mxu0 0.0
    %123 = vmatpush1.msra.mxu0 %v90
    %124 = vmatprep.subr.mxu0 0.0
    %125 = vmatpush1.msra.mxu0 %v91
    %126 = vmatprep.subr.mxu0 0.0
    %127 = vmatpush1.msra.mxu0 %v92
    %128 = vmatprep.subr.mxu0 0.0
    %129 = vmatpush1.msra.mxu0 %v93
    %130 = vmatprep.subr.mxu0 0.0
    %131 = vmatpush1.msra.mxu0 %v94
    %132 = vmatprep.subr.mxu0 0.0
    %133 = vmatpush1.msra.mxu0 %v95
    %134 = vmatprep.subr.mxu0 0.0
    %135 = vmatpush1.msra.mxu0 %v96
    %136 = vmatprep.subr.mxu0 0.0
    %137 = vmatpush1.msra.mxu0 0.0
    %138 = vmatprep.subr.mxu0 0.0
    %139 = vmatpush1.msra.mxu0 0.0
    %140 = vmatprep.subr.mxu0 0.0
    %141 = vmatpush1.msra.mxu0 0.0
    %142 = vmatprep.subr.mxu0 0.0
    %143 = vmatpush1.msra.mxu0 0.0
    %144 = vmatprep.subr.mxu0 0.0
    %145 = vmatpush1.msra.mxu0 0.0
    %146 = vmatprep.subr.mxu0 0.0
    %147 = vmatpush1.msra.mxu0 0.0
    %148 = vmatprep.subr.mxu0 0.0
    %149 = vmatpush1.msra.mxu0 0.0
    %150 = vmatprep.subr.mxu0 0.0
    %151 = vmatpush1.msra.mxu0 0.0
    %152 = vmatprep.subr.mxu0 0.0
    %153 = vmatpush1.msra.mxu0 0.0
    %154 = vmatprep.subr.mxu0 0.0
    %155 = vmatpush1.msra.mxu0 0.0
    %156 = vmatprep.subr.mxu0 0.0
    %157 = vmatpush1.msra.mxu0 0.0
    %158 = vmatprep.subr.mxu0 0.0
    %159 = vmatpush1.msra.mxu0 0.0
    %160 = vmatprep.subr.mxu0 0.0
    %161 = vmatpush1.msra.mxu0 0.0
    %162 = vmatprep.subr.mxu0 0.0
    %163 = vmatpush1.msra.mxu0 0.0
    %164 = vmatprep.subr.mxu0 0.0
    %165 = vmatpush1.msra.mxu0 0.0
    %166 = vmatprep.subr.mxu0 0.0
    %167 = vmatpush1.msra.mxu0 0.0
    %168 = vmatprep.mubr.f32.mxu0 0.0
    %169 = vmatmul.mubr.f32.gmra.mrb[0].mxu0 %v80
    %v170 = vpop.f32.mrb[0].mxu0
    %v171 = vadd.f32 %v102, %v170
    %v172 = vpop.f32.mrb[0].mxu0
    %173 = vdwg.mxu0
    %v174 = vtanh.pop %v171
    %175 = vst [vmem:[#allocation2] sm:$0xff] %v174
    %v176 = vld [vmem:[#allocation2] sm:$0xff]
    %v177 = vld [vmem:[#allocation9] sm:$0xff]
    %v178 = vld [vmem:[#allocation9 + $0x8] sm:$0xff]
    %v179 = vld [vmem:[#allocation9 + $0x10] sm:$0xff]
    %v180 = vld [vmem:[#allocation9 + $0x18] sm:$0xff]
    %v181 = vld [vmem:[#allocation9 + $0x20] sm:$0xff]
    %v182 = vld [vmem:[#allocation9 + $0x28] sm:$0xff]
    %v183 = vld [vmem:[#allocation9 + $0x30] sm:$0xff]
    %v184 = vld [vmem:[#allocation9 + $0x38] sm:$0xff]
    %v185 = vld [vmem:[#allocation9 + $0x40] sm:$0xff]
    %v186 = vld [vmem:[#allocation9 + $0x48] sm:$0xff]
    %v187 = vld [vmem:[#allocation9 + $0x50] sm:$0xff]
    %v188 = vld [vmem:[#allocation9 + $0x58] sm:$0xff]
    %v189 = vld [vmem:[#allocation9 + $0x60] sm:$0xff]
    %v190 = vld [vmem:[#allocation9 + $0x68] sm:$0xff]
    %v191 = vld [vmem:[#allocation9 + $0x70] sm:$0xff]
    %v192 = vld [vmem:[#allocation9 + $0x78] sm:$0xff]
    %v193 = vld [vmem:[%s4] sm:$0x1]
    %v195 = vlaneseq
    %v196 = vshrl.u32 %v195, 7
    %v197 = vsub.s32 0, %v196
    %v198 = vrot.slane %v193, %v197
    %200 = vmatprep.subr.mxu0 0.0
    %201 = vmatpush1.msra.mxu0 %v177
    %202 = vmatprep.subr.mxu0 0.0
    %203 = vmatpush1.msra.mxu0 %v178
    %204 = vmatprep.subr.mxu0 0.0
    %205 = vmatpush1.msra.mxu0 %v179
    %206 = vmatprep.subr.mxu0 0.0
    %207 = vmatpush1.msra.mxu0 %v180
    %208 = vmatprep.subr.mxu0 0.0
    %209 = vmatpush1.msra.mxu0 %v181
    %210 = vmatprep.subr.mxu0 0.0
    %211 = vmatpush1.msra.mxu0 %v182
    %212 = vmatprep.subr.mxu0 0.0
    %213 = vmatpush1.msra.mxu0 %v183
    %214 = vmatprep.subr.mxu0 0.0
    %215 = vmatpush1.msra.mxu0 %v184
    %216 = vmatprep.subr.mxu0 0.0
    %217 = vmatpush1.msra.mxu0 %v185
    %218 = vmatprep.subr.mxu0 0.0
    %219 = vmatpush1.msra.mxu0 %v186
    %220 = vmatprep.subr.mxu0 0.0
    %221 = vmatpush1.msra.mxu0 %v187
    %222 = vmatprep.subr.mxu0 0.0
    %223 = vmatpush1.msra.mxu0 %v188
    %224 = vmatprep.subr.mxu0 0.0
    %225 = vmatpush1.msra.mxu0 %v189
    %226 = vmatprep.subr.mxu0 0.0
    %227 = vmatpush1.msra.mxu0 %v190
    %228 = vmatprep.subr.mxu0 0.0
    %229 = vmatpush1.msra.mxu0 %v191
    %230 = vmatprep.subr.mxu0 0.0
    %231 = vmatpush1.msra.mxu0 %v192
    %232 = vmatprep.subr.mxu0 0.0
    %233 = vmatpush1.msra.mxu0 0.0
    %234 = vmatprep.subr.mxu0 0.0
    %235 = vmatpush1.msra.mxu0 0.0
    %236 = vmatprep.subr.mxu0 0.0
    %237 = vmatpush1.msra.mxu0 0.0
    %238 = vmatprep.subr.mxu0 0.0
    %239 = vmatpush1.msra.mxu0 0.0
    %240 = vmatprep.subr.mxu0 0.0
    %241 = vmatpush1.msra.mxu0 0.0
    %242 = vmatprep.subr.mxu0 0.0
    %243 = vmatpush1.msra.mxu0 0.0
    %244 = vmatprep.subr.mxu0 0.0
    %245 = vmatpush1.msra.mxu0 0.0
    %246 = vmatprep.subr.mxu0 0.0
    %247 = vmatpush1.msra.mxu0 0.0
    %248 = vmatprep.subr.mxu0 0.0
    %249 = vmatpush1.msra.mxu0 0.0
    %250 = vmatprep.subr.mxu0 0.0
    %251 = vmatpush1.msra.mxu0 0.0
    %252 = vmatprep.subr.mxu0 0.0
    %253 = vmatpush1.msra.mxu0 0.0
    %254 = vmatprep.subr.mxu0 0.0
    %255 = vmatpush1.msra.mxu0 0.0
    %256 = vmatprep.subr.mxu0 0.0
    %257 = vmatpush1.msra.mxu0 0.0
    %258 = vmatprep.subr.mxu0 0.0
    %259 = vmatpush1.msra.mxu0 0.0
    %260 = vmatprep.subr.mxu0 0.0
    %261 = vmatpush1.msra.mxu0 0.0
    %262 = vmatprep.subr.mxu0 0.0
    %263 = vmatpush1.msra.mxu0 0.0
    %264 = vmatprep.mubr.f32.mxu0 0.0
    %265 = vmatmul.mubr.f32.gmra.mrb[0].mxu0 %v176
    %v266 = vpop.f32.mrb[0].mxu0
    %v267 = vadd.f32 %v198, %v266
    %v268 = vpop.f32.mrb[0].mxu0
    %269 = vdwg.mxu0
    %v270 = vtanh.pop %v267
    %271 = vst [vmem:[#allocation3] sm:$0xff] %v270
    %v272 = vld [vmem:[#allocation3] sm:$0xff]
    %v273 = vld [vmem:[#allocation10] sm:$0xff]
    %v274 = vld [vmem:[#allocation10 + $0x8] sm:$0xff]
    %v275 = vld [vmem:[#allocation10 + $0x10] sm:$0xff]
    %v276 = vld [vmem:[#allocation10 + $0x18] sm:$0xff]
    %v277 = vld [vmem:[#allocation10 + $0x20] sm:$0xff]
    %v278 = vld [vmem:[#allocation10 + $0x28] sm:$0xff]
    %v279 = vld [vmem:[#allocation10 + $0x30] sm:$0xff]
    %v280 = vld [vmem:[#allocation10 + $0x38] sm:$0xff]
    %v281 = vld [vmem:[#allocation10 + $0x40] sm:$0xff]
    %v282 = vld [vmem:[#allocation10 + $0x48] sm:$0xff]
    %v283 = vld [vmem:[#allocation10 + $0x50] sm:$0xff]
    %v284 = vld [vmem:[#allocation10 + $0x58] sm:$0xff]
    %v285 = vld [vmem:[#allocation10 + $0x60] sm:$0xff]
    %v286 = vld [vmem:[#allocation10 + $0x68] sm:$0xff]
    %v287 = vld [vmem:[#allocation10 + $0x70] sm:$0xff]
    %v288 = vld [vmem:[#allocation10 + $0x78] sm:$0xff]
    %v289 = vld [vmem:[%s6] sm:$0x1]
    %v291 = vlaneseq
    %v292 = vshrl.u32 %v291, 7
    %v293 = vsub.s32 0, %v292
    %v294 = vrot.slane %v289, %v293
    %296 = vmatprep.subr.mxu0 0.0
    %297 = vmatpush1.msra.mxu0 %v273
    %298 = vmatprep.subr.mxu0 0.0
    %299 = vmatpush1.msra.mxu0 %v274
    %300 = vmatprep.subr.mxu0 0.0
    %301 = vmatpush1.msra.mxu0 %v275
    %302 = vmatprep.subr.mxu0 0.0
    %303 = vmatpush1.msra.mxu0 %v276
    %304 = vmatprep.subr.mxu0 0.0
    %305 = vmatpush1.msra.mxu0 %v277
    %306 = vmatprep.subr.mxu0 0.0
    %307 = vmatpush1.msra.mxu0 %v278
    %308 = vmatprep.subr.mxu0 0.0
    %309 = vmatpush1.msra.mxu0 %v279
    %310 = vmatprep.subr.mxu0 0.0
    %311 = vmatpush1.msra.mxu0 %v280
    %312 = vmatprep.subr.mxu0 0.0
    %313 = vmatpush1.msra.mxu0 %v281
    %314 = vmatprep.subr.mxu0 0.0
    %315 = vmatpush1.msra.mxu0 %v282
    %316 = vmatprep.subr.mxu0 0.0
    %317 = vmatpush1.msra.mxu0 %v283
    %318 = vmatprep.subr.mxu0 0.0
    %319 = vmatpush1.msra.mxu0 %v284
    %320 = vmatprep.subr.mxu0 0.0
    %321 = vmatpush1.msra.mxu0 %v285
    %322 = vmatprep.subr.mxu0 0.0
    %323 = vmatpush1.msra.mxu0 %v286
    %324 = vmatprep.subr.mxu0 0.0
    %325 = vmatpush1.msra.mxu0 %v287
    %326 = vmatprep.subr.mxu0 0.0
    %327 = vmatpush1.msra.mxu0 %v288
    %328 = vmatprep.subr.mxu0 0.0
    %329 = vmatpush1.msra.mxu0 0.0
    %330 = vmatprep.subr.mxu0 0.0
    %331 = vmatpush1.msra.mxu0 0.0
    %332 = vmatprep.subr.mxu0 0.0
    %333 = vmatpush1.msra.mxu0 0.0
    %334 = vmatprep.subr.mxu0 0.0
    %335 = vmatpush1.msra.mxu0 0.0
    %336 = vmatprep.subr.mxu0 0.0
    %337 = vmatpush1.msra.mxu0 0.0
    %338 = vmatprep.subr.mxu0 0.0
    %339 = vmatpush1.msra.mxu0 0.0
    %340 = vmatprep.subr.mxu0 0.0
    %341 = vmatpush1.msra.mxu0 0.0
    %342 = vmatprep.subr.mxu0 0.0
    %343 = vmatpush1.msra.mxu0 0.0
    %344 = vmatprep.subr.mxu0 0.0
    %345 = vmatpush1.msra.mxu0 0.0
    %346 = vmatprep.subr.mxu0 0.0
    %347 = vmatpush1.msra.mxu0 0.0
    %348 = vmatprep.subr.mxu0 0.0
    %349 = vmatpush1.msra.mxu0 0.0
    %350 = vmatprep.subr.mxu0 0.0
    %351 = vmatpush1.msra.mxu0 0.0
    %352 = vmatprep.subr.mxu0 0.0
    %353 = vmatpush1.msra.mxu0 0.0
    %354 = vmatprep.subr.mxu0 0.0
    %355 = vmatpush1.msra.mxu0 0.0
    %356 = vmatprep.subr.mxu0 0.0
    %357 = vmatpush1.msra.mxu0 0.0
    %358 = vmatprep.subr.mxu0 0.0
    %359 = vmatpush1.msra.mxu0 0.0
    %360 = vmatprep.mubr.f32.mxu0 0.0
    %361 = vmatmul.mubr.f32.gmra.mrb[0].mxu0 %v272
    %v362 = vpop.f32.mrb[0].mxu0
    %v363 = vadd.f32 %v294, %v362
    %v364 = vpop.f32.mrb[0].mxu0
    %365 = vdwg.mxu0
    %366 = vst [vmem:[#allocation12] sm:$0xff] %v363
    // Predicated region
    $region46: #{tpu_custom_call.1} parent=1 // pred_check
      _
    $region47: #{tpu_custom_call.1} parent=1 // pred_check_branch
      %368 = sbr.rel (0) target = $region49
    $region48: #{tpu_custom_call.1} parent=1 // pred_region
      %s370 = ssub.s32 128, 128
      %371 = vsyncadd [#allocation6], %s370
      %s373 = sshll.u32 [#allocation12], 4
      %s374 = int_to_ptr.vmem [resolvable:$true] %s373
      %376 = dma.vmem_to_hbm [thread:$0]  %s374, 128, %s7, [#allocation6]
    $region49: #{tpu_custom_call.1} parent=1 // pred_fallthru
      _
    // Predicated region
    $region50: #{tpu_custom_call.1} parent=1 // pred_check
      _
    $region51: #{tpu_custom_call.1} parent=1 // pred_check_branch
      %378 = sbr.rel (0) target = $region53
    $region52: #{tpu_custom_call.1} parent=1 // pred_region
      %379 = dma.done [#allocation6], 128
    $region53: #{tpu_custom_call.1} parent=1 // pred_fallthru
      _
    %380 = vsyncpa [#allocation5], 1
    %381 = vsyncpa [#allocation8], 1
    %382 = vsyncpa [#allocation11], 1
    %383 = vsyncpa [#allocation6], 1

</llo_original>
